<compile_context>
chip_gen: v7x
topology: tpu7x:2x2x1
jax: 0.10.0
libtpu: 0.0.40
codegen_flags: <defaults>
</compile_context>

<pallas_src>
import functools

import jax
import jax.numpy as jnp
from jax.experimental import pallas as pl
from jax.experimental.pallas import tpu as pltpu


def _round_up(x, m):
    return ((x + m - 1) // m) * m


def _mlp_kernel(x_ref, w13_ref, w2_ref, o_ref, acc_ref, *, th):
    """One (token_tile, hidden_tile) step of the fused SwiGLU MLP.

    x_ref  : (TM, DIM)       bf16 token tile (resident across hidden axis)
    w13_ref: (DIM, 2*TH)     fused [W1^T | W3^T] hidden slab (streamed)
    w2_ref : (TH, DIM)       W2^T hidden slice (streamed)
    o_ref  : (TM, DIM)       output tile (written on the last hidden step)
    acc_ref: (TM, DIM) f32   down-projection accumulator (VMEM scratch)
    """
    h_idx = pl.program_id(1)

    @pl.when(h_idx == 0)
    def _():
        acc_ref[...] = jnp.zeros_like(acc_ref)

    x = x_ref[...]
    # Fused gate+up projection: one MXU matmul, f32 accumulation.
    gu = jnp.dot(x, w13_ref[...], preferred_element_type=jnp.float32)
    g = gu[:, :th]                               # gate (static, tile-aligned)
    u = gu[:, th:]                               # up
    h = (g * jax.nn.sigmoid(g)) * u              # SwiGLU in f32 (VPU / EUP)
    # Partial down projection for this hidden tile, accumulated in f32.
    acc_ref[...] += jnp.dot(h.astype(w2_ref.dtype), w2_ref[...],
                            preferred_element_type=jnp.float32)

    @pl.when(h_idx == pl.num_programs(1) - 1)
    def _():
        o_ref[...] = acc_ref[...].astype(o_ref.dtype)


def prepare_llama_mlp_weights(w1, w2, w3, *, th=512, dtype=jnp.bfloat16):
    """One-time (load-time) weight repack — do NOT call per forward pass.

    w1, w3: (hidden, dim) gate/up nn.Linear weights
    w2    : (dim, hidden) down nn.Linear weight
    Returns:
      w13: (n_h, dim, 2*th) — per hidden tile h, a CONTIGUOUS slab
           [W1_tile^T | W3_tile^T]; hidden zero-padded to a multiple of th.
      w2t: (hidden_padded, dim) — W2^T, zero-padded rows for padded hidden.
    """
    hidden, dim = w1.shape
    th = max(128, (min(th, _round_up(hidden, 128)) // 128) * 128)
    hidden_p = _round_up(hidden, th)
    n_h = hidden_p // th
    pad = hidden_p - hidden

    w1c = jnp.asarray(w1, dtype)
    w3c = jnp.asarray(w3, dtype)
    w2t = jnp.asarray(w2, dtype).T                       # (hidden, dim)
    if pad:
        w1c = jnp.pad(w1c, ((0, pad), (0, 0)))
        w3c = jnp.pad(w3c, ((0, pad), (0, 0)))
        w2t = jnp.pad(w2t, ((0, pad), (0, 0)))

    w1r = w1c.reshape(n_h, th, dim).transpose(0, 2, 1)   # (n_h, dim, th)
    w3r = w3c.reshape(n_h, th, dim).transpose(0, 2, 1)   # (n_h, dim, th)
    w13 = jnp.concatenate([w1r, w3r], axis=2)            # (n_h, dim, 2*th)
    return w13, w2t


def _tpu_defaults():
    kind = ""
    try:
        kind = jax.devices()[0].device_kind.lower()
    except Exception:
        pass
    vmem_cap = 64 * 1024 * 1024  # conservative (v7x per-TC)
    try:
        vmem_cap = int(pltpu.get_tpu_info().vmem_capacity_bytes)
    except Exception:
        if ("v5" in kind) or ("v6" in kind):
            vmem_cap = 128 * 1024 * 1024
    n_cores = 2 if "v7" in kind else 1
    return kind, vmem_cap, n_cores


def _vmem_footprint(tm, th, dim, w_itemsize, out_itemsize):
    weights = 2 * (dim * 2 * th + th * dim) * w_itemsize   # dbl-buffered w13+w2
    xbuf = 2 * tm * dim * w_itemsize                       # dbl-buffered x tile
    obuf = 2 * tm * dim * out_itemsize                     # dbl-buffered out
    acc = tm * dim * 4                                     # f32 accumulator
    inter = tm * 2 * th * 4 + tm * th * 4 + tm * th * w_itemsize  # gu, h, h_bf16
    margin = 4 << 20                                       # compiler scratch
    return weights + xbuf + obuf + acc + inter + margin


@functools.partial(jax.jit, static_argnames=("tm",))
def llama_mlp_pallas(x, w13, w2t, *, tm=None):
    """x: (batch, seq, dim); w13/w2t from prepare_llama_mlp_weights."""
    b, s, dim = x.shape
    n_h, dim2, two_th = w13.shape
    th = two_th // 2
    hidden_p, dim3 = w2t.shape
    assert dim2 == dim and dim3 == dim, "weight dims must match x"
    assert hidden_p == n_h * th, "w2t / w13 hidden padding mismatch"
    assert dim % 128 == 0, "model dim must be a multiple of 128"

    compute_dtype = w13.dtype
    w_itemsize = jnp.dtype(compute_dtype).itemsize
    out_itemsize = w_itemsize                  # kernel emits compute dtype
    tokens = b * s

    kind, vmem_cap, n_cores = _tpu_defaults()
    if tm is None:
        tm = 512 if "v7" in kind else (1024 if "v6" in kind else 256)

    # Token tile: cap at the (8-aligned) token count; keep both TCs busy.
    tm_eff = min(tm, _round_up(tokens, 8))
    if n_cores > 1 and pl.cdiv(tokens, tm_eff) == 1 and tokens > 8:
        tm_eff = _round_up(pl.cdiv(tokens, n_cores), 8)
    # Shrink the token tile until the footprint fits the device VMEM budget.
    budget = max(8 << 20, vmem_cap - (4 << 20))
    while (_vmem_footprint(tm_eff, th, dim, w_itemsize, out_itemsize) > budget
           and tm_eff > 8):
        tm_eff = max(8, tm_eff // 2)

    tokens_padded = pl.cdiv(tokens, tm_eff) * tm_eff
    n_t = tokens_padded // tm_eff
    grid = (n_t, n_h)

    x2d = x.reshape(tokens, dim).astype(compute_dtype)
    if tokens_padded != tokens:
        x2d = jnp.pad(x2d, ((0, tokens_padded - tokens), (0, 0)))

    vmem_limit = int(min(budget, vmem_cap - (2 << 20)))

    cost = pl.CostEstimate(
        flops=6 * tokens_padded * dim * hidden_p,
        transcendentals=tokens_padded * hidden_p,
        bytes_accessed=(tokens_padded * dim * (w_itemsize + out_itemsize)
                        + n_t * (w13.size + w2t.size) * w_itemsize),
    )

    kernel = functools.partial(_mlp_kernel, th=th)
    out2d = pl.pallas_call(
        kernel,
        out_shape=jax.ShapeDtypeStruct((tokens_padded, dim), compute_dtype),
        grid_spec=pltpu.PrefetchScalarGridSpec(
            num_scalar_prefetch=0,
            grid=grid,
            in_specs=[
                # x tile: resident across the hidden (reduction) axis.
                pl.BlockSpec((tm_eff, dim), lambda i, h: (i, 0)),
                # fused [W1|W3]^T slab: contiguous per hidden tile.
                pl.BlockSpec((None, dim, 2 * th), lambda i, h: (h, 0, 0)),
                # W2^T hidden slice (contiguous rows).
                pl.BlockSpec((th, dim), lambda i, h: (h, 0)),
            ],
            out_specs=pl.BlockSpec((tm_eff, dim), lambda i, h: (i, 0)),
            scratch_shapes=[pltpu.VMEM((tm_eff, dim), jnp.float32)],
        ),
        compiler_params=pltpu.CompilerParams(
            dimension_semantics=("parallel", "arbitrary"),
            vmem_limit_bytes=vmem_limit),
        cost_estimate=cost,
    )(x2d, w13, w2t)

    return out2d[:tokens].reshape(b, s, dim).astype(x.dtype)


def llama_mlp_ref(x, w1, w2, w3):
    xf = x.astype(jnp.float32)
    g = jnp.einsum("bsd,hd->bsh", xf, w1.astype(jnp.float32))
    u = jnp.einsum("bsd,hd->bsh", xf, w3.astype(jnp.float32))
    h = (g * jax.nn.sigmoid(g)) * u
    o = jnp.einsum("bsh,dh->bsd", h, w2.astype(jnp.float32))
    return o.astype(x.dtype)


if __name__ == "__main__":
    # Small shapes consistent with the Llama MLP structure.
    batch, seq, dim, hidden = 2, 8, 128, 512

    key = jax.random.PRNGKey(0)
    kx, k1, k2, k3 = jax.random.split(key, 4)

    x = jax.random.normal(kx, (batch, seq, dim), dtype=jnp.float32)
    # nn.Linear weight shapes: w1/w3: (hidden, dim), w2: (dim, hidden)
    w1 = jax.random.normal(k1, (hidden, dim), dtype=jnp.float32) * 0.05
    w2 = jax.random.normal(k2, (dim, hidden), dtype=jnp.float32) * 0.05
    w3 = jax.random.normal(k3, (hidden, dim), dtype=jnp.float32) * 0.05

    th = 256  # 2 hidden tiles at hidden=512 -> exercises the accumulator path
    w13, w2t = prepare_llama_mlp_weights(w1, w2, w3, th=th, dtype=jnp.bfloat16)

    out = llama_mlp_pallas(x, w13, w2t)
    out = jax.block_until_ready(out)

    ref = llama_mlp_ref(x, w1, w2, w3)
    assert out.shape == (batch, seq, dim)
    err = float(jnp.max(jnp.abs(out.astype(jnp.float32) - ref)))
    scale = float(jnp.max(jnp.abs(ref))) + 1e-6
    # bf16 operands / bf16 output vs f32 reference -> loosened tolerance.
    assert err <= 5e-2 * scale + 5e-3, f"max abs err {err} (ref scale {scale})"

    print("KERNEL_OK")
</pallas_src>

<mosaic_0001>
module attributes {stable_mosaic.version = 11 : i64} {
  func.func @_mlp_kernel(%arg0: i32, %arg1: i32, %arg2: memref<16x128xbf16, #tpu.memory_space<vmem>>, %arg3: memref<1x128x512xbf16, #tpu.memory_space<vmem>>, %arg4: memref<256x128xbf16, #tpu.memory_space<vmem>>, %arg5: memref<16x128xbf16, #tpu.memory_space<vmem>>, %arg6: memref<16x128xf32, #tpu.memory_space<vmem>>) attributes {dimension_semantics = [#tpu.dimension_semantics<parallel>, #tpu.dimension_semantics<arbitrary>], iteration_bounds = array<i64: 1, 2>, scalar_prefetch = 0 : i64, scratch_operands = 1 : i64, tpu.core_type = #tpu.core_type<tc>, window_params = [{transform_indices = @transform_0, window_bounds = array<i64: 16, 128>}, {transform_indices = @transform_1, window_bounds = array<i64: 1, 128, 512>}, {transform_indices = @transform_2, window_bounds = array<i64: 256, 128>}, {transform_indices = @transform_3, window_bounds = array<i64: 16, 128>}]} {
    %c0_i32 = arith.constant 0 : i32
    %0 = arith.cmpi eq, %arg1, %c0_i32 : i32
    %1 = arith.extui %0 : i1 to i32
    %c0_i32_0 = arith.constant 0 : i32
    %2 = arith.cmpi ne, %1, %c0_i32_0 : i32
    scf.if %2 {
      %cst_14 = arith.constant 0.000000e+00 : f32
      %25 = vector.broadcast %cst_14 : f32 to vector<16x128xf32>
      %c0_15 = arith.constant 0 : index
      %c0_16 = arith.constant 0 : index
      %26 = vector.load %arg6[%c0_15, %c0_16] : memref<16x128xf32, #tpu.memory_space<vmem>>, vector<16x128xf32>
      tpu.vector_store %arg6[%c0_15, %c0_16], %25 {strides = array<i32>} : memref<16x128xf32, #tpu.memory_space<vmem>>, vector<16x128xf32>,
    } else {
    }
    %c0 = arith.constant 0 : index
    %c0_1 = arith.constant 0 : index
    %3 = vector.load %arg2[%c0, %c0_1] : memref<16x128xbf16, #tpu.memory_space<vmem>>, vector<16x128xbf16>
    %c0_2 = arith.constant 0 : index
    %c0_3 = arith.constant 0 : index
    %c0_4 = arith.constant 0 : index
    %4 = vector.load %arg3[%c0_2, %c0_3, %c0_4] : memref<1x128x512xbf16, #tpu.memory_space<vmem>>, vector<1x128x512xbf16>
    %5 = vector.shape_cast %4 : vector<1x128x512xbf16> to vector<128x512xbf16>
    %cst = arith.constant dense<0.000000e+00> : vector<16x512xf32>
    %6 = tpu.matmul %3, %5, %cst {dimension_numbers = #tpu.dot_dimension_numbers<[1], [0], [0], [1], [0, 0, 1, 1], [], []>} : vector<16x128xbf16>, vector<128x512xbf16>, vector<16x512xf32> -> vector<16x512xf32>
    %7 = vector.extract_strided_slice %6 {offsets = [0, 0], sizes = [16, 256], strides = [1, 1]} : vector<16x512xf32> to vector<16x256xf32>
    %8 = vector.extract_strided_slice %6 {offsets = [0, 256], sizes = [16, 256], strides = [1, 1]} : vector<16x512xf32> to vector<16x256xf32>
    %9 = arith.negf %7 : vector<16x256xf32>
    %10 = math.exp %9 : vector<16x256xf32>
    %cst_5 = arith.constant 1.000000e+00 : f32
    %11 = vector.broadcast %cst_5 : f32 to vector<16x256xf32>
    %12 = arith.addf %11, %10 : vector<16x256xf32>
    %13 = arith.divf %11, %12 : vector<16x256xf32>
    %14 = arith.mulf %7, %13 : vector<16x256xf32>
    %15 = arith.mulf %14, %8 : vector<16x256xf32>
    %c0_6 = arith.constant 0 : index
    %c0_7 = arith.constant 0 : index
    %16 = vector.load %arg6[%c0_6, %c0_7] : memref<16x128xf32, #tpu.memory_space<vmem>>, vector<16x128xf32>
    %17 = arith.truncf %15 : vector<16x256xf32> to vector<16x256xbf16>
    %c0_8 = arith.constant 0 : index
    %c0_9 = arith.constant 0 : index
    %18 = vector.load %arg4[%c0_8, %c0_9] : memref<256x128xbf16, #tpu.memory_space<vmem>>, vector<256x128xbf16>
    %cst_10 = arith.constant dense<0.000000e+00> : vector<16x128xf32>
    %19 = tpu.matmul %17, %18, %cst_10 {dimension_numbers = #tpu.dot_dimension_numbers<[1], [0], [0], [1], [0, 0, 1, 1], [], []>} : vector<16x256xbf16>, vector<256x128xbf16>, vector<16x128xf32> -> vector<16x128xf32>
    %20 = arith.addf %16, %19 : vector<16x128xf32>
    %c0_11 = arith.constant 0 : index
    %c0_12 = arith.constant 0 : index
    %21 = vector.load %arg6[%c0_11, %c0_12] : memref<16x128xf32, #tpu.memory_space<vmem>>, vector<16x128xf32>
    tpu.vector_store %arg6[%c0_11, %c0_12], %20 {strides = array<i32>} : memref<16x128xf32, #tpu.memory_space<vmem>>, vector<16x128xf32>,
    %c1_i32 = arith.constant 1 : i32
    %22 = arith.cmpi eq, %arg1, %c1_i32 : i32
    %23 = arith.extui %22 : i1 to i32
    %c0_i32_13 = arith.constant 0 : i32
    %24 = arith.cmpi ne, %23, %c0_i32_13 : i32
    scf.if %24 {
      %c0_14 = arith.constant 0 : index
      %c0_15 = arith.constant 0 : index
      %25 = vector.load %arg6[%c0_14, %c0_15] : memref<16x128xf32, #tpu.memory_space<vmem>>, vector<16x128xf32>
      %26 = arith.truncf %25 : vector<16x128xf32> to vector<16x128xbf16>
      %c0_16 = arith.constant 0 : index
      %c0_17 = arith.constant 0 : index
      %27 = vector.load %arg5[%c0_16, %c0_17] : memref<16x128xbf16, #tpu.memory_space<vmem>>, vector<16x128xbf16>
      tpu.vector_store %arg5[%c0_16, %c0_17], %26 {strides = array<i32>} : memref<16x128xbf16, #tpu.memory_space<vmem>>, vector<16x128xbf16>,
    } else {
    }
    return
  }
  func.func @transform_0(%arg0: i32, %arg1: i32) -> (i32, i32) {
    %c0_i32 = arith.constant 0 : i32
    %c0_i32_0 = arith.constant 0 : i32
    return %arg0, %c0_i32 : i32, i32
  }
  func.func @transform_1(%arg0: i32, %arg1: i32) -> (i32, i32, i32) {
    %c0_i32 = arith.constant 0 : i32
    %c0_i32_0 = arith.constant 0 : i32
    %c0_i32_1 = arith.constant 0 : i32
    return %arg1, %c0_i32, %c0_i32_0 : i32, i32, i32
  }
  func.func @transform_2(%arg0: i32, %arg1: i32) -> (i32, i32) {
    %c0_i32 = arith.constant 0 : i32
    %c0_i32_0 = arith.constant 0 : i32
    return %arg1, %c0_i32 : i32, i32
  }
  func.func @transform_3(%arg0: i32, %arg1: i32) -> (i32, i32) {
    %c0_i32 = arith.constant 0 : i32
    %c0_i32_0 = arith.constant 0 : i32
    return %arg0, %c0_i32 : i32, i32
  }
}

</mosaic_0001>

<llo_original>
// kernel: llama_mlp_pallas.1
$region0: #{llama_mlp_pallas.1}
  #allocation0 [shape = 'u32[]', space=smem, size = 0x4, offset = 0x4, fixed_abs, tag = 'smem constant byte address 0x4 - core index']
  #allocation1 [shape = 'u32[144,128]{1,0:T(1,128)}', space=vmem, size = 0x12000, scoped, tag = 'internal scratch']
  #allocation2 [shape = 'f32[16,128]{1,0:T(8,128)}', space=vmem, size = 0x2000, scoped, tag = 'scratch operand']
  %s0 = inlined_call_operand.vmem [shape: bf16[16,128], index: 0, kind: input, shape index: {}]
  %s1 = inlined_call_operand.hbm [shape: bf16[2,128,512], index: 1, kind: input, shape index: {}]
  %s2 = inlined_call_operand.hbm [shape: bf16[512,128], index: 2, kind: input, shape index: {}]
  %s3 = inlined_call_operand.vmem [shape: bf16[16,128], index: 3, kind: output, shape index: {}]
  %s4 = sld [smem:[#allocation0]]
  $region61: #{llama_mlp_pallas.1} parent=0
    _
  %s6 = ssub.s32 1, %s4
  %s7 = scalar_select 0, %s6, %s4
  $region1: #{llama_mlp_pallas.1} parent=0
    #allocation3 [shape = 'u8[262144]{0}', space=vmem, size = 0x40000, scoped, tag = 'input window, operand 1']
    #allocation4 [shape = 's32[2]{0}', space=sflag, size = 0x8, scoped, tag = 'scoped memory for llama_mlp_pallas.1']
    #allocation5 [shape = 'u8[131072]{0}', space=vmem, size = 0x20000, scoped, tag = 'input window, operand 2']
    #allocation6 [shape = 's32[2]{0}', space=sflag, size = 0x8, scoped, tag = 'scoped memory for llama_mlp_pallas.1']
    %8 = vsyncpa [#allocation4], 0
    %s9 = scalar_lea.sflag [#allocation4], 1
    %10 = vsyncpa %s9, 0
    %11 = vsyncpa [#allocation6], 0
    %s12 = scalar_lea.sflag [#allocation6], 1
    %13 = vsyncpa %s12, 0
    loop: start=0, step=1, limit=4
    $region2: #{llama_mlp_pallas.1} parent=1 // loop_pre_header
      _
    $region3: #{llama_mlp_pallas.1} parent=1 // loop_header
      %s15 = sphi 0, %s19
      %p16 = scmp.ge.s32.totalorder %s15, 4
      %s22 = sphi 0, %s34
      %s23 = sphi 0, %s30
      %s24 = sphi 0, %s22
      %s25 = sphi 0, %s23
      %s26 = sphi 0, %s24
      %s27 = sphi 0, %s25
      %s37 = sphi 0, %s39
      %s40 = sphi 0, %s37
      %s41 = sphi 0, %s40
      %s57 = sphi 0, %s41
      %s63 = sphi 0, %s65
      %s66 = sphi 0, %s63
      %s67 = sphi 0, %s66
      %s83 = sphi 0, %s67
      %s89 = sphi 0, %s91
      %s92 = sphi 0, %s89
      %s93 = sphi 0, %s92
      %s109 = sphi 0, %s93
      %s115 = sphi 0, %s117
      %s118 = sphi 0, %s115
      %s119 = sphi 0, %s118
      %s135 = sphi 0, %s119
    $region4: #{llama_mlp_pallas.1} parent=1 // loop_header_branch
      %18 = sbr.rel (%p16) target = $region8
    $region5: #{llama_mlp_pallas.1} parent=1 // loop_body
      %s20 = ssub.s32 %s15, 1
      %s21 = ssub.s32 %s15, 2
      %s28 = sadd.s32 1, %s23
      %p29 = scmp.ge.s32.totalorder %s28, 2
      %s30 = scalar_select %p29, 0, %s28
      %s31 = sadd.s32 1, %s22
      %s32 = scalar_select %p29, %s31, %s22
      %p33 = scmp.ge.s32.totalorder %s32, 1
      %s34 = scalar_select %p33, 0, %s32
      %s35 = ssub.s32 %s22, %s34
      %p36 = scmp.eq.s32.totalorder %s35, 0
      %s38 = sadd.s32 %s37, 1
      %s39 = scalar_select %p36, %s37, %s38
      %p42 = pneg %p36
      %p43 = scmp.eq.s32.totalorder %s15, 1
      %p44 = por %p42, %p43
      %p45 = scmp.ne.s32.totalorder %s37, %s40
      %p46 = scmp.eq.s32.totalorder %s15, 0
      %p47 = por %p45, %p46
      %p48 = scmp.ne.s32.totalorder %s37, %s40
      %p49 = scmp.eq.s32.totalorder %s20, 1
      %p50 = por %p48, %p49
      %p51 = scmp.ne.s32.totalorder %s40, %s41
      %p52 = scmp.eq.s32.totalorder %s20, 0
      %p53 = por %p51, %p52
      %p54 = scmp.ne.s32.totalorder %s40, %s41
      %p55 = scmp.eq.s32.totalorder %s21, 1
      %p56 = por %p54, %p55
      %p58 = scmp.ne.s32.totalorder %s41, %s57
      %p59 = scmp.eq.s32.totalorder %s21, 0
      %p60 = por %p58, %p59
      %s61 = ssub.s32 %s23, %s30
      %p62 = scmp.eq.s32.totalorder %s61, 0
      %s64 = sadd.s32 %s63, 1
      %s65 = scalar_select %p62, %s63, %s64
      %p68 = pneg %p62
      %p69 = scmp.eq.s32.totalorder %s15, 1
      %p70 = por %p68, %p69
      %p71 = scmp.ne.s32.totalorder %s63, %s66
      %p72 = scmp.eq.s32.totalorder %s15, 0
      %p73 = por %p71, %p72
      %p74 = scmp.ne.s32.totalorder %s63, %s66
      %p75 = scmp.eq.s32.totalorder %s20, 1
      %p76 = por %p74, %p75
      %p77 = scmp.ne.s32.totalorder %s66, %s67
      %p78 = scmp.eq.s32.totalorder %s20, 0
      %p79 = por %p77, %p78
      %p80 = scmp.ne.s32.totalorder %s66, %s67
      %p81 = scmp.eq.s32.totalorder %s21, 1
      %p82 = por %p80, %p81
      %p84 = scmp.ne.s32.totalorder %s67, %s83
      %p85 = scmp.eq.s32.totalorder %s21, 0
      %p86 = por %p84, %p85
      %s87 = ssub.s32 %s23, %s30
      %p88 = scmp.eq.s32.totalorder %s87, 0
      %s90 = sadd.s32 %s89, 1
      %s91 = scalar_select %p88, %s89, %s90
      %p94 = pneg %p88
      %p95 = scmp.eq.s32.totalorder %s15, 1
      %p96 = por %p94, %p95
      %p97 = scmp.ne.s32.totalorder %s89, %s92
      %p98 = scmp.eq.s32.totalorder %s15, 0
      %p99 = por %p97, %p98
      %p100 = scmp.ne.s32.totalorder %s89, %s92
      %p101 = scmp.eq.s32.totalorder %s20, 1
      %p102 = por %p100, %p101
      %p103 = scmp.ne.s32.totalorder %s92, %s93
      %p104 = scmp.eq.s32.totalorder %s20, 0
      %p105 = por %p103, %p104
      %p106 = scmp.ne.s32.totalorder %s92, %s93
      %p107 = scmp.eq.s32.totalorder %s21, 1
      %p108 = por %p106, %p107
      %p110 = scmp.ne.s32.totalorder %s93, %s109
      %p111 = scmp.eq.s32.totalorder %s21, 0
      %p112 = por %p110, %p111
      %s113 = ssub.s32 %s22, %s34
      %p114 = scmp.eq.s32.totalorder %s113, 0
      %s116 = sadd.s32 %s115, 1
      %s117 = scalar_select %p114, %s115, %s116
      %p120 = pneg %p114
      %p121 = scmp.eq.s32.totalorder %s15, 1
      %p122 = por %p120, %p121
      %p123 = scmp.ne.s32.totalorder %s115, %s118
      %p124 = scmp.eq.s32.totalorder %s15, 0
      %p125 = por %p123, %p124
      %p126 = scmp.ne.s32.totalorder %s115, %s118
      %p127 = scmp.eq.s32.totalorder %s20, 1
      %p128 = por %p126, %p127
      %p129 = scmp.ne.s32.totalorder %s118, %s119
      %p130 = scmp.eq.s32.totalorder %s20, 0
      %p131 = por %p129, %p130
      %p132 = scmp.ne.s32.totalorder %s118, %s119
      %p133 = scmp.eq.s32.totalorder %s21, 1
      %p134 = por %p132, %p133
      %p136 = scmp.ne.s32.totalorder %s119, %s135
      %p137 = scmp.eq.s32.totalorder %s21, 0
      %p138 = por %p136, %p137
      %p139 = scmp.le.s32.totalorder 1, %s15
      %p140 = scmp.lt.s32.totalorder %s15, 3
      %p141 = pnand %p139, %p140
      %p142 = pneg %p141
      // Predicated region
      $region9: #{llama_mlp_pallas.1} parent=5 // pred_check
        _
      $region10: #{llama_mlp_pallas.1} parent=5 // pred_check_branch
        %144 = sbr.rel (%p141) target = $region12
      $region11: #{llama_mlp_pallas.1} parent=5 // pred_region
        %s145 = ssub.s32 %s15, 1
        // Predicated region
        $region13: #{llama_mlp_pallas.1} parent=11 // pred_check
          %p146 = pneg %p53
        $region14: #{llama_mlp_pallas.1} parent=11 // pred_check_branch
          %148 = sbr.rel (%p146) target = $region16
        $region15: #{llama_mlp_pallas.1} parent=11 // pred_region
          %s149 = smul.u32 2, %s24
          %p150 = scmp.lt.s32.totalorder %s149, 1
          %s151 = scalar_select %p150, %s149, 1
          %s152 = smul.addr %s151, 4
          %s153 = scalar_lea.vmem %s0, %s152
          %s154 = smul.u32 2, %s24
        $region16: #{llama_mlp_pallas.1} parent=11 // pred_fallthru
          _
      $region12: #{llama_mlp_pallas.1} parent=5 // pred_fallthru
        _
      %p155 = scmp.lt.s32.totalorder %s15, 2
      // Predicated region
      $region17: #{llama_mlp_pallas.1} parent=5 // pred_check
        %p156 = pneg %p155
      $region18: #{llama_mlp_pallas.1} parent=5 // pred_check_branch
        %158 = sbr.rel (%p156) target = $region20
      $region19: #{llama_mlp_pallas.1} parent=5 // pred_region
        // Predicated region
        $region21: #{llama_mlp_pallas.1} parent=19 // pred_check
          %p159 = pneg %p73
        $region22: #{llama_mlp_pallas.1} parent=19 // pred_check_branch
          %161 = sbr.rel (%p159) target = $region24
        $region23: #{llama_mlp_pallas.1} parent=19 // pred_region
          %s162 = sand.u32 %s63, 1
          %s163 = scalar_lea.sflag [#allocation4], %s162
          %s164 = sand.u32 %s63, 1
          %s165 = smul.addr %s164, 256
          %s166 = scalar_lea.vmem [#allocation3], %s165
          %s168 = ssub.s32 4096, 4096
          %169 = vsyncadd %s163, %s168
          %s170 = smul.addr %s23, 64
          %s171 = smul.addr %s170, 64
          %s172 = scalar_lea.hbm %s1, %s171
          %s173 = sshll.u32 %s166, 4
          %s174 = int_to_ptr.vmem [resolvable:$true] %s173
          %179 = dma.hbm_to_vmem [thread:$0]  %s172, 4096, %s174, %s163, 256, 256, 16
        $region24: #{llama_mlp_pallas.1} parent=19 // pred_fallthru
          _
        // Predicated region
        $region25: #{llama_mlp_pallas.1} parent=19 // pred_check
          %p180 = pneg %p99
        $region26: #{llama_mlp_pallas.1} parent=19 // pred_check_branch
          %182 = sbr.rel (%p180) target = $region28
        $region27: #{llama_mlp_pallas.1} parent=19 // pred_region
          %s183 = sand.u32 %s89, 1
          %s184 = scalar_lea.sflag [#allocation6], %s183
          %s185 = sand.u32 %s89, 1
          %s186 = smul.addr %s185, 128
          %s187 = scalar_lea.vmem [#allocation5], %s186
          %s188 = smul.u32 32, %s23
          %s190 = ssub.s32 2048, 2048
          %191 = vsyncadd %s184, %s190
          %s192 = smul.addr %s188, 64
          %s193 = scalar_lea.hbm %s2, %s192
          %s194 = sshll.u32 %s187, 4
          %s195 = int_to_ptr.vmem [resolvable:$true] %s194
          %200 = dma.hbm_to_vmem [thread:$0]  %s193, 2048, %s195, %s184, 64, 64, 4
        $region28: #{llama_mlp_pallas.1} parent=19 // pred_fallthru
          _
      $region20: #{llama_mlp_pallas.1} parent=5 // pred_fallthru
        _
      %p201 = scmp.le.s32.totalorder 1, %s15
      %p202 = scmp.lt.s32.totalorder %s15, 3
      %p203 = pnand %p201, %p202
      %p204 = pneg %p203
      // Predicated region
      $region29: #{llama_mlp_pallas.1} parent=5 // pred_check
        _
      $region30: #{llama_mlp_pallas.1} parent=5 // pred_check_branch
        %206 = sbr.rel (%p203) target = $region32
      $region31: #{llama_mlp_pallas.1} parent=5 // pred_region
        %s207 = ssub.s32 %s15, 1
        %s208 = sand.u32 %s66, 1
        %s209 = scalar_lea.sflag [#allocation4], %s208
        %s210 = sand.u32 %s66, 1
        %s211 = smul.addr %s210, 256
        %s212 = scalar_lea.vmem [#allocation3], %s211
        // Predicated region
        $region33: #{llama_mlp_pallas.1} parent=31 // pred_check
          %p213 = pneg %p79
        $region34: #{llama_mlp_pallas.1} parent=31 // pred_check_branch
          %215 = sbr.rel (%p213) target = $region36
        $region35: #{llama_mlp_pallas.1} parent=31 // pred_region
          %216 = dma.done %s209, 4096
        $region36: #{llama_mlp_pallas.1} parent=31 // pred_fallthru
          _
        %s217 = sand.u32 %s92, 1
        %s218 = scalar_lea.sflag [#allocation6], %s217
        %s219 = sand.u32 %s92, 1
        %s220 = smul.addr %s219, 128
        %s221 = scalar_lea.vmem [#allocation5], %s220
        // Predicated region
        $region37: #{llama_mlp_pallas.1} parent=31 // pred_check
          %p222 = pneg %p105
        $region38: #{llama_mlp_pallas.1} parent=31 // pred_check_branch
          %224 = sbr.rel (%p222) target = $region40
        $region39: #{llama_mlp_pallas.1} parent=31 // pred_region
          %225 = dma.done %s218, 2048
        $region40: #{llama_mlp_pallas.1} parent=31 // pred_fallthru
          _
        %s226 = smul.u32 2, %s24
        %p227 = scmp.lt.s32.totalorder %s226, 1
        %s228 = scalar_select %p227, %s226, 1
        %s229 = smul.addr %s228, 4
        %s230 = scalar_lea.vmem %s0, %s229
        %p231 = pneg %p53
        %p232 = pneg %p50
        %s233 = sand.u32 %s66, 1
        %s234 = scalar_lea.sflag [#allocation4], %s233
        %s235 = sand.u32 %s66, 1
        %s236 = smul.addr %s235, 256
        %s237 = scalar_lea.vmem [#allocation3], %s236
        %p238 = pneg %p79
        %p239 = pneg %p76
        %s240 = sand.u32 %s92, 1
        %s241 = scalar_lea.sflag [#allocation6], %s240
        %s242 = sand.u32 %s92, 1
        %s243 = smul.addr %s242, 128
        %s244 = scalar_lea.vmem [#allocation5], %s243
        %p245 = pneg %p105
        %p246 = pneg %p102
        %p247 = pneg %p131
        %p248 = pneg %p128
        %s249 = smul.u32 2, %s24
        %p250 = scmp.lt.s32.totalorder %s249, 1
        %s251 = scalar_select %p250, %s249, 1
        %s252 = smul.addr %s251, 4
        %s253 = scalar_lea.vmem %s3, %s252
        %s254 = smul.u32 2, %s24
        %p255 = scmp.lt.s32.totalorder %s254, 1
        %s256 = scalar_select %p255, %s254, 1
        %s257 = smul.addr %s256, 4
        %s258 = scalar_lea.vmem %s0, %s257
        %s259 = smul.u32 2, %s24
        %s260 = smul.u32 32, %s25
        %s261 = smul.u32 2, %s24
        %p262 = scmp.lt.s32.totalorder %s261, 1
        %s263 = scalar_select %p262, %s261, 1
        %s264 = smul.addr %s263, 4
        %s265 = scalar_lea.vmem %s3, %s264
        %s266 = smul.u32 2, %s24
        %p268 = scmp.eq.s32.totalorder %s25, 0
        // Predicated region
        $region41: #{llama_mlp_pallas.1} parent=31 // pred_check
          %p269 = pneg %p268
        $region42: #{llama_mlp_pallas.1} parent=31 // pred_check_branch
          %271 = sbr.rel (%p269) target = $region44
        $region43: #{llama_mlp_pallas.1} parent=31 // pred_region
          %272 = vst [vmem:[#allocation2] sm:$0xff] 0.0
          %273 = vst [vmem:[#allocation2 + $0x8] sm:$0xff] 0.0
        $region44: #{llama_mlp_pallas.1} parent=31 // pred_fallthru
          _
        %v274 = vld [vmem:[%s258] sm:$0xf]
        %v275 = vld [vmem:[%s258 + $0x4] sm:$0xf]
        %v276 = vld [vmem:[%s212] sm:$0xff]
        %v277 = vld [vmem:[%s212 + $0x8] sm:$0xff]
        %v278 = vld [vmem:[%s212 + $0x10] sm:$0xff]
        %v279 = vld [vmem:[%s212 + $0x18] sm:$0xff]
        %v280 = vld [vmem:[%s212 + $0x20] sm:$0xff]
        %v281 = vld [vmem:[%s212 + $0x28] sm:$0xff]
        %v282 = vld [vmem:[%s212 + $0x30] sm:$0xff]
        %v283 = vld [vmem:[%s212 + $0x38] sm:$0xff]
        %v284 = vld [vmem:[%s212 + $0x40] sm:$0xff]
        %v285 = vld [vmem:[%s212 + $0x48] sm:$0xff]
        %v286 = vld [vmem:[%s212 + $0x50] sm:$0xff]
        %v287 = vld [vmem:[%s212 + $0x58] sm:$0xff]
        %v288 = vld [vmem:[%s212 + $0x60] sm:$0xff]
        %v289 = vld [vmem:[%s212 + $0x68] sm:$0xff]
        %v290 = vld [vmem:[%s212 + $0x70] sm:$0xff]
        %v291 = vld [vmem:[%s212 + $0x78] sm:$0xff]
        %v292 = vld [vmem:[%s212 + $0x80] sm:$0xff]
        %v293 = vld [vmem:[%s212 + $0x88] sm:$0xff]
        %v294 = vld [vmem:[%s212 + $0x90] sm:$0xff]
        %v295 = vld [vmem:[%s212 + $0x98] sm:$0xff]
        %v296 = vld [vmem:[%s212 + $0xa0] sm:$0xff]
        %v297 = vld [vmem:[%s212 + $0xa8] sm:$0xff]
        %v298 = vld [vmem:[%s212 + $0xb0] sm:$0xff]
        %v299 = vld [vmem:[%s212 + $0xb8] sm:$0xff]
        %v300 = vld [vmem:[%s212 + $0xc0] sm:$0xff]
        %v301 = vld [vmem:[%s212 + $0xc8] sm:$0xff]
        %v302 = vld [vmem:[%s212 + $0xd0] sm:$0xff]
        %v303 = vld [vmem:[%s212 + $0xd8] sm:$0xff]
        %v304 = vld [vmem:[%s212 + $0xe0] sm:$0xff]
        %v305 = vld [vmem:[%s212 + $0xe8] sm:$0xff]
        %v306 = vld [vmem:[%s212 + $0xf0] sm:$0xff]
        %v307 = vld [vmem:[%s212 + $0xf8] sm:$0xff]
        %v310 = vunpack.c.l.b16 %v274
        %v311 = vunpack.c.l.b16 %v275
        %v312 = vpack.c.b16 %v311, %v310
        %v346 = vunpack.c.l.b16 %v276
        %v347 = vunpack.c.h.b16 %v276
        %v348 = vunpack.c.l.b16 %v277
        %v349 = vunpack.c.h.b16 %v277
        %v350 = vunpack.c.l.b16 %v278
        %v351 = vunpack.c.h.b16 %v278
        %v352 = vunpack.c.l.b16 %v279
        %v353 = vunpack.c.h.b16 %v279
        %v354 = vunpack.c.l.b16 %v280
        %v355 = vunpack.c.h.b16 %v280
        %v356 = vunpack.c.l.b16 %v281
        %v357 = vunpack.c.h.b16 %v281
        %v358 = vunpack.c.l.b16 %v282
        %v359 = vunpack.c.h.b16 %v282
        %v360 = vunpack.c.l.b16 %v283
        %v361 = vunpack.c.h.b16 %v283
        %v362 = vunpack.c.l.b16 %v284
        %v363 = vunpack.c.h.b16 %v284
        %v364 = vunpack.c.l.b16 %v285
        %v365 = vunpack.c.h.b16 %v285
        %v366 = vunpack.c.l.b16 %v286
        %v367 = vunpack.c.h.b16 %v286
        %v368 = vunpack.c.l.b16 %v287
        %v369 = vunpack.c.h.b16 %v287
        %v370 = vunpack.c.l.b16 %v288
        %v371 = vunpack.c.h.b16 %v288
        %v372 = vunpack.c.l.b16 %v289
        %v373 = vunpack.c.h.b16 %v289
        %v374 = vunpack.c.l.b16 %v290
        %v375 = vunpack.c.h.b16 %v290
        %v376 = vunpack.c.l.b16 %v291
        %v377 = vunpack.c.h.b16 %v291
        %v378 = vunpack.c.l.b16 %v292
        %v379 = vunpack.c.h.b16 %v292
        %v380 = vunpack.c.l.b16 %v293
        %v381 = vunpack.c.h.b16 %v293
        %v382 = vunpack.c.l.b16 %v294
        %v383 = vunpack.c.h.b16 %v294
        %v384 = vunpack.c.l.b16 %v295
        %v385 = vunpack.c.h.b16 %v295
        %v386 = vunpack.c.l.b16 %v296
        %v387 = vunpack.c.h.b16 %v296
        %v388 = vunpack.c.l.b16 %v297
        %v389 = vunpack.c.h.b16 %v297
        %v390 = vunpack.c.l.b16 %v298
        %v391 = vunpack.c.h.b16 %v298
        %v392 = vunpack.c.l.b16 %v299
        %v393 = vunpack.c.h.b16 %v299
        %v394 = vunpack.c.l.b16 %v300
        %v395 = vunpack.c.h.b16 %v300
        %v396 = vunpack.c.l.b16 %v301
        %v397 = vunpack.c.h.b16 %v301
        %v398 = vunpack.c.l.b16 %v302
        %v399 = vunpack.c.h.b16 %v302
        %v400 = vunpack.c.l.b16 %v303
        %v401 = vunpack.c.h.b16 %v303
        %v402 = vunpack.c.l.b16 %v304
        %v403 = vunpack.c.h.b16 %v304
        %v404 = vunpack.c.l.b16 %v305
        %v405 = vunpack.c.h.b16 %v305
        %v406 = vunpack.c.l.b16 %v306
        %v407 = vunpack.c.h.b16 %v306
        %v408 = vunpack.c.l.b16 %v307
        %v409 = vunpack.c.h.b16 %v307
        %v410 = vpack.c.b16 %v350, %v346
        %v411 = vpack.c.b16 %v351, %v347
        %v412 = vpack.c.b16 %v352, %v348
        %v413 = vpack.c.b16 %v353, %v349
        %v414 = vpack.c.b16 %v358, %v354
        %v415 = vpack.c.b16 %v359, %v355
        %v416 = vpack.c.b16 %v360, %v356
        %v417 = vpack.c.b16 %v361, %v357
        %v418 = vpack.c.b16 %v366, %v362
        %v419 = vpack.c.b16 %v367, %v363
        %v420 = vpack.c.b16 %v368, %v364
        %v421 = vpack.c.b16 %v369, %v365
        %v422 = vpack.c.b16 %v374, %v370
        %v423 = vpack.c.b16 %v375, %v371
        %v424 = vpack.c.b16 %v376, %v372
        %v425 = vpack.c.b16 %v377, %v373
        %v426 = vpack.c.b16 %v382, %v378
        %v427 = vpack.c.b16 %v383, %v379
        %v428 = vpack.c.b16 %v384, %v380
        %v429 = vpack.c.b16 %v385, %v381
        %v430 = vpack.c.b16 %v390, %v386
        %v431 = vpack.c.b16 %v391, %v387
        %v432 = vpack.c.b16 %v392, %v388
        %v433 = vpack.c.b16 %v393, %v389
        %v434 = vpack.c.b16 %v398, %v394
        %v435 = vpack.c.b16 %v399, %v395
        %v436 = vpack.c.b16 %v400, %v396
        %v437 = vpack.c.b16 %v401, %v397
        %v438 = vpack.c.b16 %v406, %v402
        %v439 = vpack.c.b16 %v407, %v403
        %v440 = vpack.c.b16 %v408, %v404
        %v441 = vpack.c.b16 %v409, %v405
        %474 = vmatprep.subr.bf16.mxu0 %v411
        %475 = vmatpush1.bf16.msra.mxu0 %v410
        %476 = vmatprep.subr.bf16.mxu0 %v415
        %477 = vmatpush1.bf16.msra.mxu0 %v414
        %478 = vmatprep.subr.bf16.mxu0 %v419
        %479 = vmatpush1.bf16.msra.mxu0 %v418
        %480 = vmatprep.subr.bf16.mxu0 %v423
        %481 = vmatpush1.bf16.msra.mxu0 %v422
        %482 = vmatprep.subr.bf16.mxu0 %v427
        %483 = vmatpush1.bf16.msra.mxu0 %v426
        %484 = vmatprep.subr.bf16.mxu0 %v431
        %485 = vmatpush1.bf16.msra.mxu0 %v430
        %486 = vmatprep.subr.bf16.mxu0 %v435
        %487 = vmatpush1.bf16.msra.mxu0 %v434
        %488 = vmatprep.subr.bf16.mxu0 %v439
        %489 = vmatpush1.bf16.msra.mxu0 %v438
        %490 = vmatprep.subr.bf16.mxu0 0
        %491 = vmatpush1.bf16.msra.mxu0 0
        %492 = vmatprep.subr.bf16.mxu0 0
        %493 = vmatpush1.bf16.msra.mxu0 0
        %494 = vmatprep.subr.bf16.mxu0 0
        %495 = vmatpush1.bf16.msra.mxu0 0
        %496 = vmatprep.subr.bf16.mxu0 0
        %497 = vmatpush1.bf16.msra.mxu0 0
        %498 = vmatprep.subr.bf16.mxu0 0
        %499 = vmatpush1.bf16.msra.mxu0 0
        %500 = vmatprep.subr.bf16.mxu0 0
        %501 = vmatpush1.bf16.msra.mxu0 0
        %502 = vmatprep.subr.bf16.mxu0 0
        %503 = vmatpush1.bf16.msra.mxu0 0
        %504 = vmatprep.subr.bf16.mxu0 0
        %505 = vmatpush1.bf16.msra.mxu0 0
        %506 = vmatprep.mubr.bf16.mxu0 0
        %507 = vmatmul.mubr.bf16.gmra.mrb[0].mxu0 %v312
        %v508 = vpop.f32.mrb[0].mxu0
        %v509 = vadd.f32 0.0, %v508
        %v510 = vpop.f32.mrb[0].mxu0
        %v511 = vadd.f32 0.0, %v510
        %v512 = vpop.f32.mrb[0].mxu0
        %v513 = vadd.f32 0.0, %v512
        %v514 = vpop.f32.mrb[0].mxu0
        %v515 = vadd.f32 0.0, %v514
        %516 = vdwg.mxu0
        %517 = vmatprep.subr.bf16.mxu0 %v413
        %518 = vmatpush1.bf16.msra.mxu0 %v412
        %519 = vmatprep.subr.bf16.mxu0 %v417
        %520 = vmatpush1.bf16.msra.mxu0 %v416
        %521 = vmatprep.subr.bf16.mxu0 %v421
        %522 = vmatpush1.bf16.msra.mxu0 %v420
        %523 = vmatprep.subr.bf16.mxu0 %v425
        %524 = vmatpush1.bf16.msra.mxu0 %v424
        %525 = vmatprep.subr.bf16.mxu0 %v429
        %526 = vmatpush1.bf16.msra.mxu0 %v428
        %527 = vmatprep.subr.bf16.mxu0 %v433
        %528 = vmatpush1.bf16.msra.mxu0 %v432
        %529 = vmatprep.subr.bf16.mxu0 %v437
        %530 = vmatpush1.bf16.msra.mxu0 %v436
        %531 = vmatprep.subr.bf16.mxu0 %v441
        %532 = vmatpush1.bf16.msra.mxu0 %v440
        %533 = vmatprep.subr.bf16.mxu0 0
        %534 = vmatpush1.bf16.msra.mxu0 0
        %535 = vmatprep.subr.bf16.mxu0 0
        %536 = vmatpush1.bf16.msra.mxu0 0
        %537 = vmatprep.subr.bf16.mxu0 0
        %538 = vmatpush1.bf16.msra.mxu0 0
        %539 = vmatprep.subr.bf16.mxu0 0
        %540 = vmatpush1.bf16.msra.mxu0 0
        %541 = vmatprep.subr.bf16.mxu0 0
        %542 = vmatpush1.bf16.msra.mxu0 0
        %543 = vmatprep.subr.bf16.mxu0 0
        %544 = vmatpush1.bf16.msra.mxu0 0
        %545 = vmatprep.subr.bf16.mxu0 0
        %546 = vmatpush1.bf16.msra.mxu0 0
        %547 = vmatprep.subr.bf16.mxu0 0
        %548 = vmatpush1.bf16.msra.mxu0 0
        %549 = vmatprep.mubr.bf16.mxu0 0
        %550 = vmatmul.mubr.bf16.gmra.mrb[0].mxu0 %v312
        %v551 = vpop.f32.mrb[0].mxu0
        %v552 = vadd.f32 0.0, %v551
        %v553 = vpop.f32.mrb[0].mxu0
        %v554 = vadd.f32 0.0, %v553
        %v555 = vpop.f32.mrb[0].mxu0
        %v556 = vadd.f32 0.0, %v555
        %v557 = vpop.f32.mrb[0].mxu0
        %v558 = vadd.f32 0.0, %v557
        %559 = vdwg.mxu0
        %v560 = vxor.u32 %v509, 2147483648
        %v561 = vxor.u32 %v511, 2147483648
        %v562 = vxor.u32 %v513, 2147483648
        %v563 = vxor.u32 %v515, 2147483648
        %v564 = vmul.f32 %v560, 1.442695
        %v565 = vpow.pop %v564
        %v566 = vmul.f32 %v561, 1.442695
        %v567 = vpow.pop %v566
        %v568 = vmul.f32 %v562, 1.442695
        %v569 = vpow.pop %v568
        %v570 = vmul.f32 %v563, 1.442695
        %v571 = vpow.pop %v570
        %v572 = vadd.f32 %v565, 1.0
        %v573 = vadd.f32 %v567, 1.0
        %v574 = vadd.f32 %v569, 1.0
        %v575 = vadd.f32 %v571, 1.0
        %v576 = vrcp.pop %v572
        %v577 = vmul.f32 1.0, %v576
        %v578 = vrcp.pop %v573
        %v579 = vmul.f32 1.0, %v578
        %v580 = vrcp.pop %v574
        %v581 = vmul.f32 1.0, %v580
        %v582 = vrcp.pop %v575
        %v583 = vmul.f32 1.0, %v582
        %v584 = vmul.f32 %v509, %v577
        %v585 = vmul.f32 %v511, %v579
        %v586 = vmul.f32 %v513, %v581
        %v587 = vmul.f32 %v515, %v583
        %v588 = vmul.f32 %v584, %v552
        %v589 = vmul.f32 %v585, %v554
        %v590 = vmul.f32 %v586, %v556
        %v591 = vmul.f32 %v587, %v558
        %v592 = vld [vmem:[#allocation2] sm:$0xff]
        %v593 = vld [vmem:[#allocation2 + $0x8] sm:$0xff]
        %v594 = vpack.c.bf16 %v590, %v588
        %v595 = vpack.c.bf16 %v591, %v589
        %v596 = vld [vmem:[%s221] sm:$0xf]
        %v597 = vld [vmem:[%s221 + $0x4] sm:$0xf]
        %v598 = vld [vmem:[%s221 + $0x8] sm:$0xf]
        %v599 = vld [vmem:[%s221 + $0xc] sm:$0xf]
        %v600 = vld [vmem:[%s221 + $0x10] sm:$0xf]
        %v601 = vld [vmem:[%s221 + $0x14] sm:$0xf]
        %v602 = vld [vmem:[%s221 + $0x18] sm:$0xf]
        %v603 = vld [vmem:[%s221 + $0x1c] sm:$0xf]
        %v604 = vld [vmem:[%s221 + $0x20] sm:$0xf]
        %v605 = vld [vmem:[%s221 + $0x24] sm:$0xf]
        %v606 = vld [vmem:[%s221 + $0x28] sm:$0xf]
        %v607 = vld [vmem:[%s221 + $0x2c] sm:$0xf]
        %v608 = vld [vmem:[%s221 + $0x30] sm:$0xf]
        %v609 = vld [vmem:[%s221 + $0x34] sm:$0xf]
        %v610 = vld [vmem:[%s221 + $0x38] sm:$0xf]
        %v611 = vld [vmem:[%s221 + $0x3c] sm:$0xf]
        %v612 = vld [vmem:[%s221 + $0x40] sm:$0xf]
        %v613 = vld [vmem:[%s221 + $0x44] sm:$0xf]
        %v614 = vld [vmem:[%s221 + $0x48] sm:$0xf]
        %v615 = vld [vmem:[%s221 + $0x4c] sm:$0xf]
        %v616 = vld [vmem:[%s221 + $0x50] sm:$0xf]
        %v617 = vld [vmem:[%s221 + $0x54] sm:$0xf]
        %v618 = vld [vmem:[%s221 + $0x58] sm:$0xf]
        %v619 = vld [vmem:[%s221 + $0x5c] sm:$0xf]
        %v620 = vld [vmem:[%s221 + $0x60] sm:$0xf]
        %v621 = vld [vmem:[%s221 + $0x64] sm:$0xf]
        %v622 = vld [vmem:[%s221 + $0x68] sm:$0xf]
        %v623 = vld [vmem:[%s221 + $0x6c] sm:$0xf]
        %v624 = vld [vmem:[%s221 + $0x70] sm:$0xf]
        %v625 = vld [vmem:[%s221 + $0x74] sm:$0xf]
        %v626 = vld [vmem:[%s221 + $0x78] sm:$0xf]
        %v627 = vld [vmem:[%s221 + $0x7c] sm:$0xf]
        %v660 = vunpack.c.l.b16 %v596
        %v661 = vunpack.c.l.b16 %v597
        %v662 = vunpack.c.l.b16 %v598
        %v663 = vunpack.c.l.b16 %v599
        %v664 = vunpack.c.l.b16 %v600
        %v665 = vunpack.c.l.b16 %v601
        %v666 = vunpack.c.l.b16 %v602
        %v667 = vunpack.c.l.b16 %v603
        %v668 = vunpack.c.l.b16 %v604
        %v669 = vunpack.c.l.b16 %v605
        %v670 = vunpack.c.l.b16 %v606
        %v671 = vunpack.c.l.b16 %v607
        %v672 = vunpack.c.l.b16 %v608
        %v673 = vunpack.c.l.b16 %v609
        %v674 = vunpack.c.l.b16 %v610
        %v675 = vunpack.c.l.b16 %v611
        %v676 = vunpack.c.l.b16 %v612
        %v677 = vunpack.c.l.b16 %v613
        %v678 = vunpack.c.l.b16 %v614
        %v679 = vunpack.c.l.b16 %v615
        %v680 = vunpack.c.l.b16 %v616
        %v681 = vunpack.c.l.b16 %v617
        %v682 = vunpack.c.l.b16 %v618
        %v683 = vunpack.c.l.b16 %v619
        %v684 = vunpack.c.l.b16 %v620
        %v685 = vunpack.c.l.b16 %v621
        %v686 = vunpack.c.l.b16 %v622
        %v687 = vunpack.c.l.b16 %v623
        %v688 = vunpack.c.l.b16 %v624
        %v689 = vunpack.c.l.b16 %v625
        %v690 = vunpack.c.l.b16 %v626
        %v691 = vunpack.c.l.b16 %v627
        %v692 = vpack.c.b16 %v661, %v660
        %v693 = vpack.c.b16 %v663, %v662
        %v694 = vpack.c.b16 %v665, %v664
        %v695 = vpack.c.b16 %v667, %v666
        %v696 = vpack.c.b16 %v669, %v668
        %v697 = vpack.c.b16 %v671, %v670
        %v698 = vpack.c.b16 %v673, %v672
        %v699 = vpack.c.b16 %v675, %v674
        %v700 = vpack.c.b16 %v677, %v676
        %v701 = vpack.c.b16 %v679, %v678
        %v702 = vpack.c.b16 %v681, %v680
        %v703 = vpack.c.b16 %v683, %v682
        %v704 = vpack.c.b16 %v685, %v684
        %v705 = vpack.c.b16 %v687, %v686
        %v706 = vpack.c.b16 %v689, %v688
        %v707 = vpack.c.b16 %v691, %v690
        %724 = vmatprep.subr.bf16.mxu0 0
        %725 = vmatpush1.bf16.msra.mxu0 %v692
        %726 = vmatprep.subr.bf16.mxu0 0
        %727 = vmatpush1.bf16.msra.mxu0 %v693
        %728 = vmatprep.subr.bf16.mxu0 0
        %729 = vmatpush1.bf16.msra.mxu0 %v694
        %730 = vmatprep.subr.bf16.mxu0 0
        %731 = vmatpush1.bf16.msra.mxu0 %v695
        %732 = vmatprep.subr.bf16.mxu0 0
        %733 = vmatpush1.bf16.msra.mxu0 %v696
        %734 = vmatprep.subr.bf16.mxu0 0
        %735 = vmatpush1.bf16.msra.mxu0 %v697
        %736 = vmatprep.subr.bf16.mxu0 0
        %737 = vmatpush1.bf16.msra.mxu0 %v698
        %738 = vmatprep.subr.bf16.mxu0 0
        %739 = vmatpush1.bf16.msra.mxu0 %v699
        %740 = vmatprep.subr.bf16.mxu0 0
        %741 = vmatpush1.bf16.msra.mxu0 %v700
        %742 = vmatprep.subr.bf16.mxu0 0
        %743 = vmatpush1.bf16.msra.mxu0 %v701
        %744 = vmatprep.subr.bf16.mxu0 0
        %745 = vmatpush1.bf16.msra.mxu0 %v702
        %746 = vmatprep.subr.bf16.mxu0 0
        %747 = vmatpush1.bf16.msra.mxu0 %v703
        %748 = vmatprep.subr.bf16.mxu0 0
        %749 = vmatpush1.bf16.msra.mxu0 %v704
        %750 = vmatprep.subr.bf16.mxu0 0
        %751 = vmatpush1.bf16.msra.mxu0 %v705
        %752 = vmatprep.subr.bf16.mxu0 0
        %753 = vmatpush1.bf16.msra.mxu0 %v706
        %754 = vmatprep.subr.bf16.mxu0 0
        %755 = vmatpush1.bf16.msra.mxu0 %v707
        %756 = vmatprep.mubr.bf16.mxu0 %v595
        %757 = vmatmul.mubr.bf16.gmra.mrb[0].mxu0 %v594
        %v758 = vpop.f32.mrb[0].mxu0
        %v759 = vadd.f32 0.0, %v758
        %v760 = vpop.f32.mrb[0].mxu0
        %v761 = vpop.f32.mrb[0].mxu0
        %v762 = vadd.f32 0.0, %v761
        %v763 = vpop.f32.mrb[0].mxu0
        %764 = vdwg.mxu0
        %v765 = vadd.f32 %v592, %v759
        %v766 = vadd.f32 %v593, %v762
        %767 = vst [vmem:[#allocation2] sm:$0xff] %v765
        %768 = vst [vmem:[#allocation2 + $0x8] sm:$0xff] %v766
        %p769 = scmp.eq.s32.totalorder %s25, 1
        // Predicated region
        $region45: #{llama_mlp_pallas.1} parent=31 // pred_check
          %p770 = pneg %p769
        $region46: #{llama_mlp_pallas.1} parent=31 // pred_check_branch
          %772 = sbr.rel (%p770) target = $region48
        $region47: #{llama_mlp_pallas.1} parent=31 // pred_region
          %v773 = vld [vmem:[#allocation2] sm:$0xff]
          %v774 = vld [vmem:[#allocation2 + $0x8] sm:$0xff]
          %v775 = vpack.c.bf16 %v774, %v773
          %v777 = vunpack.c.l.b16 %v775
          %v778 = vunpack.c.h.b16 %v775
          %v779 = vpack.c.b16 %v777, %v777
          %v780 = vpack.c.b16 %v778, %v778
          %783 = vst [vmem:[%s265] sm:$0xf] %v779
          %784 = vst [vmem:[%s265 + $0x4] sm:$0xf] %v780
        $region48: #{llama_mlp_pallas.1} parent=31 // pred_fallthru
          _
        %s785 = smul.u32 2, %s24
        %p786 = scmp.lt.s32.totalorder %s785, 1
        %s787 = scalar_select %p786, %s785, 1
        %s788 = smul.addr %s787, 4
        %s789 = scalar_lea.vmem %s3, %s788
        // Predicated region
        $region49: #{llama_mlp_pallas.1} parent=31 // pred_check
          %p790 = pneg %p128
        $region50: #{llama_mlp_pallas.1} parent=31 // pred_check_branch
          %792 = sbr.rel (%p790) target = $region52
        $region51: #{llama_mlp_pallas.1} parent=31 // pred_region
          %s793 = smul.u32 2, %s24
        $region52: #{llama_mlp_pallas.1} parent=31 // pred_fallthru
          _
        // Predicated region
        $region53: #{llama_mlp_pallas.1} parent=31 // pred_check
          %p794 = pneg %p128
        $region54: #{llama_mlp_pallas.1} parent=31 // pred_check_branch
          %796 = sbr.rel (%p794) target = $region56
        $region55: #{llama_mlp_pallas.1} parent=31 // pred_region
          %s797 = smul.u32 2, %s24
          %p798 = scmp.lt.s32.totalorder %s797, 1
          %s799 = scalar_select %p798, %s797, 1
          %s800 = smul.addr %s799, 4
          %s801 = scalar_lea.vmem %s3, %s800
        $region56: #{llama_mlp_pallas.1} parent=31 // pred_fallthru
          _
      $region32: #{llama_mlp_pallas.1} parent=5 // pred_fallthru
        _
      %p802 = scmp.le.s32.totalorder 2, %s15
      // Predicated region
      $region57: #{llama_mlp_pallas.1} parent=5 // pred_check
        %p803 = pneg %p802
      $region58: #{llama_mlp_pallas.1} parent=5 // pred_check_branch
        %805 = sbr.rel (%p803) target = $region60
      $region59: #{llama_mlp_pallas.1} parent=5 // pred_region
        %s806 = ssub.s32 %s15, 2
      $region60: #{llama_mlp_pallas.1} parent=5 // pred_fallthru
        _
    $region6: #{llama_mlp_pallas.1} parent=1 // loop_footer
      %s19 = sadd.s32 1, %s15
    $region7: #{llama_mlp_pallas.1} parent=1 // loop_footer_branch
      %14 = sbr.rel target = $region3
    $region8: #{llama_mlp_pallas.1} parent=1 // loop_exit
      _
    %807 = vsyncpa [#allocation4], 1
    %s808 = scalar_lea.sflag [#allocation4], 1
    %809 = vsyncpa %s808, 1
    %810 = vsyncpa [#allocation6], 1
    %s811 = scalar_lea.sflag [#allocation6], 1
    %812 = vsyncpa %s811, 1

</llo_original>
